<compile_context>
chip_gen: v5e
topology: v5e:2x2
jax: 0.10.0
libtpu: 0.0.40
codegen_flags: <defaults>
</compile_context>

<pallas_src>
import functools

import jax
import jax.numpy as jnp
import numpy as np
from jax.experimental import pallas as pl
from jax.experimental.pallas import tpu as pltpu


# ----------------------------- VMEM budget (per generation) -----------------------------

def _query_vmem_budget():
    """vmem_limit_bytes derived from the chip: ~75% of physical VMEM, capped at
    100 MiB.  v5e/v6e -> ~96-100 MiB, v7x (64 MiB/TC) -> 48 MiB."""
    try:
        cap = pltpu.get_tpu_info().vmem_capacity_bytes
    except Exception:
        cap = 64 * 1024 * 1024  # conservative fallback (v7x per-TensorCore)
    return int(min(cap * 3 // 4, 100 * 1024 * 1024))


_VMEM_LIMIT = _query_vmem_budget()


def _row_block_target():
    # Larger streaming tiles amortize the ~0.35 us per-grid-step overhead
    # (~85% of HBM roofline at 512-1024-row f32 tiles).  Keep 512 on v7x.
    return 1024 if _VMEM_LIMIT >= 64 * 1024 * 1024 else 512


# ----------------------------- block-size helpers -----------------------------

def _pick_row_block(n_rows, target):
    """Row-block for the big (T*B)-row matmul kernels (multiple of 8, or full)."""
    if n_rows <= target:
        return n_rows
    for rb in range(target, 7, -1):
        if n_rows % rb == 0 and rb % 8 == 0:
            return rb
    return n_rows


def _pick_time_block(seq_len, target=64):
    """Largest time block <= target dividing seq_len (per-step stores removed the
    vreg-pressure reason to keep this small)."""
    for tb in range(min(seq_len, target), 0, -1):
        if seq_len % tb == 0:
            return tb
    return seq_len


# ----------------------------- hoisted input projection -----------------------------

def _gates_x_kernel(x_ref, w_ref, b_ref, out_ref):
    """gates_x = sum_p x[p] @ W[p] + b, stored as one dense (rb, 8H) slab.

    x_ref   : (P, RB, Din)   input rows; P=1 (raw feat) or P=2 (prev fwd/bwd hidden)
    w_ref   : (P, Din, 8H)   columns = [fwd gates (4H) | bwd gates (4H)]
    b_ref   : (1, 8H)        combined b_ih + b_hh per direction
    out_ref : (RB, 8H)       lane-dense; the fwd/bwd split happens in the
                             consumer's BlockSpec (free DMA column offset).
    """
    P = x_ref.shape[0]
    acc = jnp.dot(x_ref[0], w_ref[0], preferred_element_type=jnp.float32)
    for p in range(1, P):
        acc = acc + jnp.dot(x_ref[p], w_ref[p], preferred_element_type=jnp.float32)
    acc = acc + b_ref[...]
    out_ref[...] = acc.astype(out_ref.dtype)


def gates_projection(x_parts, w_parts, bias, *, out_dtype, row_block=None):
    """x_parts: (P, T*B, Din), w_parts: (P, Din, 8H), bias: (1, 8H) -> (T*B, 8H)."""
    P, n_rows, d_in = x_parts.shape
    eight_h = w_parts.shape[2]
    rb = row_block if row_block is not None else _pick_row_block(n_rows, _row_block_target())

    return pl.pallas_call(
        _gates_x_kernel,
        out_shape=jax.ShapeDtypeStruct((n_rows, eight_h), out_dtype),
        grid_spec=pltpu.PrefetchScalarGridSpec(
            num_scalar_prefetch=0,
            grid=(n_rows // rb,),
            in_specs=[
                pl.BlockSpec((P, rb, d_in), lambda i: (0, i, 0)),
                pl.BlockSpec((P, d_in, eight_h), lambda i: (0, 0, 0)),
                pl.BlockSpec((1, eight_h), lambda i: (0, 0)),
            ],
            out_specs=pl.BlockSpec((rb, eight_h), lambda i: (i, 0)),
        ),
        compiler_params=pltpu.CompilerParams(
            dimension_semantics=("parallel",),
            vmem_limit_bytes=_VMEM_LIMIT),
    )(x_parts, w_parts, bias)


# ----------------------------- fused bidirectional recurrence -----------------------------

def _bilstm_rec_kernel(gx_ref, whh_ref, out_ref, h_scr, c_scr, *, tb_steps):
    """Process `tb_steps` time steps of one direction per grid step.

    Grid = (direction d in {0 fwd, 1 bwd}  [parallel], time-block t [arbitrary]).
    gx_ref  : (tb_steps, B, 4H)  precomputed x-gates (+bias) for this direction/block
    whh_ref : (1, H, 4H)         hidden->gates weight for this direction
    out_ref : (tb_steps, B, H)   hidden states, stored in ascending time order
    h_scr   : (B, H) VMEM        hidden carry (persists across time blocks)
    c_scr   : (B, H) VMEM        cell carry

    Block-level time reversal for the backward direction is done by the index_map;
    within-block reversal uses a SCALAR direction-dependent index (scalar unit),
    so only one (B, 4H) slice is ever loaded per step and h is stored per step
    (no concat / whole-slab select -> bounded vreg live ranges).
    """
    d = pl.program_id(0)
    is_fwd = d == 0

    # Carry reset relies on the grid order: direction axis outermost, time axis
    # innermost ("arbitrary") — do not reorder these grid axes.
    @pl.when(pl.program_id(1) == 0)
    def _():
        h_scr[...] = jnp.zeros_like(h_scr)
        c_scr[...] = jnp.zeros_like(c_scr)

    H = h_scr.shape[1]
    whh = whh_ref[0]                     # (H, 4H)
    h = h_scr[...]
    c = c_scr[...]
    # TODO(synk): for H identical across steps, pltpu.matmul_push_rhs / acc_lhs /
    #             pop could keep Whh resident in the MXU weight registers.
    for s in range(tb_steps):            # static unroll: LLO-visible
        idx = jnp.where(is_fwd, jnp.int32(s), jnp.int32(tb_steps - 1 - s))
        gx = gx_ref[idx].astype(jnp.float32)                     # (B, 4H)
        gates = gx + jnp.dot(h.astype(whh.dtype), whh,
                             preferred_element_type=jnp.float32)
        # Gate order matches PyTorch: i, f, g, o.
        i = jax.nn.sigmoid(gates[:, 0:H])
        f = jax.nn.sigmoid(gates[:, H:2 * H])
        g = jnp.tanh(gates[:, 2 * H:3 * H])
        o = jax.nn.sigmoid(gates[:, 3 * H:4 * H])
        c = f * c + i * g
        h = o * jnp.tanh(c)
        out_ref[idx] = h.astype(out_ref.dtype)                   # per-step store

    h_scr[...] = h
    c_scr[...] = c


def bilstm_recurrence(gates_x, whh_stack, seq_len, batch, *, time_block):
    """gates_x: (T, B, 8H), whh_stack: (2, H, 4H) -> hidden (2*T, B, H).

    Leading output axis is [fwd rows (T) | bwd rows (T)], each in time order.
    """
    H = whh_stack.shape[1]
    four_h = whh_stack.shape[2]
    n_tb = seq_len // time_block

    def t_blk(d, t):
        # forward: time block t; backward: time block (n_tb - 1 - t)
        return t + d * (n_tb - 1 - 2 * t)

    kernel = functools.partial(_bilstm_rec_kernel, tb_steps=time_block)

    return pl.pallas_call(
        kernel,
        out_shape=jax.ShapeDtypeStruct((2 * seq_len, batch, H), gates_x.dtype),
        grid_spec=pltpu.PrefetchScalarGridSpec(
            num_scalar_prefetch=0,
            grid=(2, n_tb),
            in_specs=[
                # column block index = d picks the fwd/bwd 4H half for free.
                pl.BlockSpec((time_block, batch, four_h),
                             lambda d, t: (t_blk(d, t), 0, d)),
                pl.BlockSpec((1, H, four_h), lambda d, t: (d, 0, 0)),
            ],
            out_specs=pl.BlockSpec((time_block, batch, H),
                                   lambda d, t: (d * n_tb + t_blk(d, t), 0, 0)),
            scratch_shapes=[
                pltpu.VMEM((batch, H), jnp.float32),  # h carry (f32 gate math)
                pltpu.VMEM((batch, H), jnp.float32),  # c carry
            ],
        ),
        compiler_params=pltpu.CompilerParams(
            # direction axis parallel (2 TCs on v7x), time axis sequential (carry)
            dimension_semantics=("parallel", "arbitrary"),
            vmem_limit_bytes=_VMEM_LIMIT),
    )(gates_x, whh_stack)


# ----------------------------- final Linear projection -----------------------------

def _proj_kernel(h_ref, w_ref, b_ref, o_ref):
    """out = h_fwd @ W_top + h_bwd @ W_bot + b  (split 2H contraction).
    Output columns are padded to a multiple of 128 -> lane-dense unmasked stores."""
    acc = (jnp.dot(h_ref[0], w_ref[0], preferred_element_type=jnp.float32)
           + jnp.dot(h_ref[1], w_ref[1], preferred_element_type=jnp.float32)
           + b_ref[...])
    o_ref[...] = acc.astype(o_ref.dtype)


def linear_proj(h_pair, w_stack, bias, *, row_block=None):
    """h_pair: (2, T*B, H), w_stack: (2, H, O_pad), bias: (1, O_pad) -> (T*B, O_pad)."""
    _, n_rows, H = h_pair.shape
    o_pad = w_stack.shape[2]
    rb = row_block if row_block is not None else _pick_row_block(n_rows, _row_block_target())
    return pl.pallas_call(
        _proj_kernel,
        out_shape=jax.ShapeDtypeStruct((n_rows, o_pad), jnp.float32),
        grid_spec=pltpu.PrefetchScalarGridSpec(
            num_scalar_prefetch=0,
            grid=(n_rows // rb,),
            in_specs=[
                pl.BlockSpec((2, rb, H), lambda i: (0, i, 0)),
                pl.BlockSpec((2, H, o_pad), lambda i: (0, 0, 0)),
                pl.BlockSpec((1, o_pad), lambda i: (0, 0)),
            ],
            out_specs=pl.BlockSpec((rb, o_pad), lambda i: (i, 0)),
        ),
        compiler_params=pltpu.CompilerParams(
            dimension_semantics=("parallel",),
            vmem_limit_bytes=_VMEM_LIMIT),
    )(h_pair, w_stack, bias)


# ----------------------------- parameters -----------------------------

def init_params(key, num_layers, in_dims, hidden_dims, out_dims):
    """PyTorch-style uniform(-1/sqrt(H), 1/sqrt(H)) init, deterministic."""
    params = {"lstm": []}
    k = 1.0 / np.sqrt(hidden_dims)
    keys = jax.random.split(key, num_layers * 8 + 2)
    ki = 0
    for layer_idx in range(num_layers):
        in_size = in_dims if layer_idx == 0 else 2 * hidden_dims
        layer = {}
        for d in ("f", "b"):  # forward / backward directions
            wih = jax.random.uniform(keys[ki], (4 * hidden_dims, in_size),
                                     minval=-k, maxval=k, dtype=jnp.float32); ki += 1
            whh = jax.random.uniform(keys[ki], (4 * hidden_dims, hidden_dims),
                                     minval=-k, maxval=k, dtype=jnp.float32); ki += 1
            bih = jax.random.uniform(keys[ki], (4 * hidden_dims,),
                                     minval=-k, maxval=k, dtype=jnp.float32); ki += 1
            bhh = jax.random.uniform(keys[ki], (4 * hidden_dims,),
                                     minval=-k, maxval=k, dtype=jnp.float32); ki += 1
            layer[f"wih_{d}"] = wih.T            # (in_size, 4H)
            layer[f"whh_{d}"] = whh.T            # (H, 4H)
            layer[f"b_{d}"] = bih + bhh          # (4H,)
        params["lstm"].append(layer)

    kp = 1.0 / np.sqrt(2 * hidden_dims)
    w_proj = jax.random.uniform(keys[ki], (out_dims, 2 * hidden_dims),
                                minval=-kp, maxval=kp, dtype=jnp.float32); ki += 1
    b_proj = jax.random.uniform(keys[ki], (out_dims,),
                                minval=-kp, maxval=kp, dtype=jnp.float32)
    params["proj_w"] = w_proj.T                  # (2H, out_dims)
    params["proj_b"] = b_proj                    # (out_dims,)
    return params


def pack_params(params, hidden_dims, out_dims, param_dtype=jnp.float32):
    """Repack per-direction weights into the fused Pallas layouts (done once).

    param_dtype=jnp.bfloat16 halves weight/activation HBM+VMEM traffic on v6e/v7x
    (matmuls still accumulate in f32); f32 default for exact parity at toy shapes.
    """
    H = hidden_dims
    packed = {"lstm": [], "out_dims": out_dims, "dtype": param_dtype}
    for li, layer in enumerate(params["lstm"]):
        wih_f, wih_b = layer["wih_f"], layer["wih_b"]        # (in_size, 4H)
        if li == 0:
            # Single input part: raw features -> (1, in_dims, 8H)
            wih = jnp.concatenate([wih_f, wih_b], axis=1)[None]
        else:
            # Two input parts (prev fwd / bwd hidden) -> (2, H, 8H); rows [:H] of
            # W_ih^T multiply h_fwd, rows [H:] multiply h_bwd (PyTorch concat order).
            wih = jnp.stack([
                jnp.concatenate([wih_f[:H], wih_b[:H]], axis=1),
                jnp.concatenate([wih_f[H:], wih_b[H:]], axis=1),
            ], axis=0)
        bias = jnp.concatenate([layer["b_f"], layer["b_b"]])[None]       # (1, 8H)
        whh = jnp.stack([layer["whh_f"], layer["whh_b"]], axis=0)        # (2, H, 4H)
        packed["lstm"].append({"wih": wih.astype(param_dtype),
                               "bias": bias.astype(jnp.float32),         # added to f32 acc
                               "whh": whh.astype(param_dtype)})

    # Final projection: split the 2H contraction and lane-pad the output columns
    # to a multiple of 128 so every store in the projection kernel is unmasked.
    o_pad = ((out_dims + 127) // 128) * 128
    w = jnp.stack([params["proj_w"][:H], params["proj_w"][H:]], axis=0)   # (2, H, O)
    w_pad = jnp.zeros((2, H, o_pad), jnp.float32).at[:, :, :out_dims].set(w)
    b_pad = jnp.zeros((1, o_pad), jnp.float32).at[:, :out_dims].set(params["proj_b"])
    packed["proj_w"] = w_pad.astype(param_dtype)   # (2, H, O_pad)
    packed["proj_b"] = b_pad                       # (1, O_pad)
    return packed


# ----------------------------- forward pass -----------------------------

def bilstm_forward(feat, packed, *, time_block=None):
    """feat: (seq, batch, in_dims) -> (seq, batch, out_dims)."""
    T, B, D = feat.shape
    tb = (time_block if (time_block is not None and T % time_block == 0)
          else _pick_time_block(T))
    act_dtype = packed["dtype"]

    # Rows are (t, b) row-major; the (T, B, 2H) activation is never materialized
    # (all inter-layer reshapes below are free row-major relabelings).
    x_parts = feat.astype(act_dtype).reshape(1, T * B, D)            # (1, T*B, D)
    for layer in packed["lstm"]:
        eight_h = layer["wih"].shape[2]
        H = layer["whh"].shape[1]
        gx = gates_projection(x_parts, layer["wih"], layer["bias"],
                              out_dtype=act_dtype)                   # (T*B, 8H)
        gx = gx.reshape(T, B, eight_h)
        hidden = bilstm_recurrence(gx, layer["whh"], T, B, time_block=tb)  # (2*T, B, H)
        x_parts = hidden.reshape(2, T * B, H)

    out = linear_proj(x_parts, packed["proj_w"], packed["proj_b"])   # (T*B, O_pad)
    O = packed["out_dims"]
    return out[:, :O].reshape(T, B, O)


# ----------------------------- pure-JAX reference -----------------------------

def _ref_lstm_dir(x, wih_t, whh_t, b, reverse):
    T, B, _ = x.shape
    H = whh_t.shape[0]
    xs = x[::-1] if reverse else x

    def step(carry, xt):
        h, c = carry
        gates = (jnp.dot(xt, wih_t, precision=jax.lax.Precision.HIGHEST)
                 + jnp.dot(h, whh_t, precision=jax.lax.Precision.HIGHEST) + b)
        i = jax.nn.sigmoid(gates[:, 0:H])
        f = jax.nn.sigmoid(gates[:, H:2 * H])
        g = jnp.tanh(gates[:, 2 * H:3 * H])
        o = jax.nn.sigmoid(gates[:, 3 * H:4 * H])
        c = f * c + i * g
        h = o * jnp.tanh(c)
        return (h, c), h

    init = (jnp.zeros((B, H), jnp.float32), jnp.zeros((B, H), jnp.float32))
    _, hs = jax.lax.scan(step, init, xs)
    return hs[::-1] if reverse else hs


def bilstm_reference(feat, params):
    x = feat
    for layer in params["lstm"]:
        h_f = _ref_lstm_dir(x, layer["wih_f"], layer["whh_f"], layer["b_f"], False)
        h_b = _ref_lstm_dir(x, layer["wih_b"], layer["whh_b"], layer["b_b"], True)
        x = jnp.concatenate([h_f, h_b], axis=-1)
    return (jnp.dot(x, params["proj_w"], precision=jax.lax.Precision.HIGHEST)
            + params["proj_b"])


# ----------------------------- main -----------------------------

if __name__ == "__main__":
    num_layers = 2
    in_dims = 16
    hidden_dims = 32
    out_dims = 8
    dropout_prob = 0.1  # defined in the module but unused in its forward()

    seq_len = 8
    batch = 2

    key = jax.random.PRNGKey(0)
    k_feat, k_params = jax.random.split(key)
    feat = jax.random.normal(k_feat, (seq_len, batch, in_dims), dtype=jnp.float32)
    params = init_params(k_params, num_layers, in_dims, hidden_dims, out_dims)
    packed = pack_params(params, hidden_dims, out_dims)   # param_dtype=jnp.bfloat16 for v6e/v7x

    # time_block=4 -> 2 time blocks per direction, exercising the carried h/c state.
    out = bilstm_forward(feat, packed, time_block=4)
    out = jax.block_until_ready(out)
    assert out.shape == (seq_len, batch, out_dims), out.shape

    ref = jax.block_until_ready(bilstm_reference(feat, params))
    np.testing.assert_allclose(np.asarray(out), np.asarray(ref),
                               rtol=1e-2, atol=1e-2)

    print("KERNEL_OK")
</pallas_src>

<mosaic_0001>
module attributes {stable_mosaic.version = 11 : i64} {
  func.func @_gates_x_kernel(%arg0: i32, %arg1: memref<1x16x16xf32, #tpu.memory_space<vmem>>, %arg2: memref<1x16x256xf32, #tpu.memory_space<vmem>>, %arg3: memref<1x256xf32, #tpu.memory_space<vmem>>, %arg4: memref<16x256xf32, #tpu.memory_space<vmem>>) attributes {dimension_semantics = [#tpu.dimension_semantics<parallel>], iteration_bounds = array<i64: 1>, scalar_prefetch = 0 : i64, scratch_operands = 0 : i64, tpu.core_type = #tpu.core_type<tc>, window_params = [{transform_indices = @transform_0, window_bounds = array<i64: 1, 16, 16>}, {pipeline_mode = #tpu.pipeline_mode<synchronous>, transform_indices = @transform_1, window_bounds = array<i64: 1, 16, 256>}, {pipeline_mode = #tpu.pipeline_mode<synchronous>, transform_indices = @transform_2, window_bounds = array<i64: 1, 256>}, {transform_indices = @transform_3, window_bounds = array<i64: 16, 256>}]} {
    %c0 = arith.constant 0 : index
    %c0_0 = arith.constant 0 : index
    %c0_1 = arith.constant 0 : index
    %0 = vector.load %arg1[%c0, %c0_0, %c0_1] : memref<1x16x16xf32, #tpu.memory_space<vmem>>, vector<1x16x16xf32>
    %1 = vector.shape_cast %0 : vector<1x16x16xf32> to vector<16x16xf32>
    %c0_2 = arith.constant 0 : index
    %c0_3 = arith.constant 0 : index
    %c0_4 = arith.constant 0 : index
    %2 = vector.load %arg2[%c0_2, %c0_3, %c0_4] : memref<1x16x256xf32, #tpu.memory_space<vmem>>, vector<1x16x256xf32>
    %3 = vector.shape_cast %2 : vector<1x16x256xf32> to vector<16x256xf32>
    %cst = arith.constant dense<0.000000e+00> : vector<16x256xf32>
    %4 = tpu.matmul %1, %3, %cst {dimension_numbers = #tpu.dot_dimension_numbers<[1], [0], [0], [1], [0, 0, 1, 1], [], []>} : vector<16x16xf32>, vector<16x256xf32>, vector<16x256xf32> -> vector<16x256xf32>
    %c0_5 = arith.constant 0 : index
    %c0_6 = arith.constant 0 : index
    %5 = vector.load %arg3[%c0_5, %c0_6] : memref<1x256xf32, #tpu.memory_space<vmem>>, vector<1x256xf32>
    %6 = vector.broadcast %5 : vector<1x256xf32> to vector<16x256xf32>
    %7 = arith.addf %4, %6 : vector<16x256xf32>
    %c0_7 = arith.constant 0 : index
    %c0_8 = arith.constant 0 : index
    %8 = vector.load %arg4[%c0_7, %c0_8] : memref<16x256xf32, #tpu.memory_space<vmem>>, vector<16x256xf32>
    tpu.vector_store %arg4[%c0_7, %c0_8], %7 {strides = array<i32>} : memref<16x256xf32, #tpu.memory_space<vmem>>, vector<16x256xf32>,
    return
  }
  func.func @transform_0(%arg0: i32) -> (i32, i32, i32) {
    %c0_i32 = arith.constant 0 : i32
    %c0_i32_0 = arith.constant 0 : i32
    %c0_i32_1 = arith.constant 0 : i32
    return %c0_i32, %arg0, %c0_i32_0 : i32, i32, i32
  }
  func.func @transform_1(%arg0: i32) -> (i32, i32, i32) {
    %c0_i32 = arith.constant 0 : i32
    %c0_i32_0 = arith.constant 0 : i32
    %c0_i32_1 = arith.constant 0 : i32
    %c0_i32_2 = arith.constant 0 : i32
    return %c0_i32, %c0_i32_0, %c0_i32_1 : i32, i32, i32
  }
  func.func @transform_2(%arg0: i32) -> (i32, i32) {
    %c0_i32 = arith.constant 0 : i32
    %c0_i32_0 = arith.constant 0 : i32
    %c0_i32_1 = arith.constant 0 : i32
    return %c0_i32, %c0_i32_0 : i32, i32
  }
  func.func @transform_3(%arg0: i32) -> (i32, i32) {
    %c0_i32 = arith.constant 0 : i32
    %c0_i32_0 = arith.constant 0 : i32
    return %arg0, %c0_i32 : i32, i32
  }
}

</mosaic_0001>

<llo_original>
// kernel: tpu_custom_call.1
$region0: #{tpu_custom_call.1}
  #allocation0 [shape = 'u32[]', space=smem, size = 0x4, offset = 0x4, fixed_abs, tag = 'smem constant byte address 0x4 - core index']
  #allocation1 [shape = 'u32[72,128]{1,0:T(1,128)}', space=vmem, size = 0x9000, scoped, tag = 'internal scratch']
  %s0 = inlined_call_operand.hbm [shape: f32[1,16,16], index: 0, kind: input, shape index: {}]
  %s1 = inlined_call_operand.hbm [shape: f32[1,16,256], index: 1, kind: input, shape index: {}]
  %s2 = inlined_call_operand.hbm [shape: f32[1,256], index: 2, kind: input, shape index: {}]
  %s3 = inlined_call_operand.hbm [shape: f32[16,256], index: 3, kind: output, shape index: {}]
  %s4 = sld [smem:[#allocation0]]
  $region34: #{tpu_custom_call.1} parent=0
    _
  %s6 = ssub.s32 1, %s4
  %s7 = scalar_select 0, %s6, %s4
  $region1: #{tpu_custom_call.1} parent=0
    #allocation2 [shape = 'u8[8192]{0}', space=vmem, size = 0x2000, scoped, tag = 'input window, operand 0, single buffered']
    #allocation3 [shape = 's32[1]{0}', space=sflag, size = 0x4, scoped, tag = 'scoped memory for tpu_custom_call.1']
    #allocation4 [shape = 's32[1]{0}', space=sflag, size = 0x4, scoped, tag = 'scoped memory for tpu_custom_call.1']
    #allocation5 [shape = 'u8[16384]{0}', space=vmem, size = 0x4000, scoped, tag = 'input window, operand 1, single buffered']
    #allocation6 [shape = 's32[1]{0}', space=sflag, size = 0x4, scoped, tag = 'scoped memory for tpu_custom_call.1']
    #allocation7 [shape = 'u8[1024]{0}', space=vmem, size = 0x400, scoped, tag = 'input window, operand 2, single buffered']
    #allocation8 [shape = 'u8[16384]{0}', space=vmem, size = 0x4000, scoped, tag = 'output window, operand 0, single buffered']
    %8 = vsyncpa [#allocation3], 0
    %9 = vsyncpa [#allocation6], 0
    %10 = vsyncpa [#allocation4], 0
    // Predicated region
    $region2: #{tpu_custom_call.1} parent=1 // pred_check
      _
    $region3: #{tpu_custom_call.1} parent=1 // pred_check_branch
      %12 = sbr.rel (0) target = $region5
    $region4: #{tpu_custom_call.1} parent=1 // pred_region
      %14 = vsyncadd [#allocation3], 0
      %s15 = sshll.u32 %s0, 4
      %s16 = int_to_ptr.hbm [resolvable:$true] %s15
      %s17 = sshll.u32 [#allocation2], 4
      %s18 = int_to_ptr.vmem [resolvable:$true] %s17
      %23 = dma.hbm_to_vmem [thread:$0]  %s16, 256, %s18, [#allocation3], 128, 128, 8
    $region5: #{tpu_custom_call.1} parent=1 // pred_fallthru
      _
    // Predicated region
    $region6: #{tpu_custom_call.1} parent=1 // pred_check
      _
    $region7: #{tpu_custom_call.1} parent=1 // pred_check_branch
      %25 = sbr.rel (0) target = $region9
    $region8: #{tpu_custom_call.1} parent=1 // pred_region
      %27 = vsyncadd [#allocation6], 0
      %s28 = sshll.u32 %s1, 4
      %s29 = int_to_ptr.hbm [resolvable:$true] %s28
      %s30 = sshll.u32 [#allocation5], 4
      %s31 = int_to_ptr.vmem [resolvable:$true] %s30
      %36 = dma.hbm_to_vmem [thread:$0]  %s29, 512, %s31, [#allocation6], 256, 256, 16
    $region9: #{tpu_custom_call.1} parent=1 // pred_fallthru
      _
    // Predicated region
    $region10: #{tpu_custom_call.1} parent=1 // pred_check
      _
    $region11: #{tpu_custom_call.1} parent=1 // pred_check_branch
      %38 = sbr.rel (0) target = $region13
    $region12: #{tpu_custom_call.1} parent=1 // pred_region
      %40 = vsyncadd [#allocation6], 0
      %s42 = sshll.u32 %s2, 4
      %s43 = int_to_ptr.hbm [resolvable:$true] %s42
      %s44 = sshll.u32 [#allocation7], 4
      %s45 = int_to_ptr.vmem [resolvable:$true] %s44
      %47 = dma.hbm_to_vmem [thread:$0]  %s43, 32, %s45, [#allocation6]
    $region13: #{tpu_custom_call.1} parent=1 // pred_fallthru
      _
    // Predicated region
    $region14: #{tpu_custom_call.1} parent=1 // pred_check
      _
    $region15: #{tpu_custom_call.1} parent=1 // pred_check_branch
      %49 = sbr.rel (0) target = $region17
    $region16: #{tpu_custom_call.1} parent=1 // pred_region
      %51 = dma.done [#allocation3], 256
    $region17: #{tpu_custom_call.1} parent=1 // pred_fallthru
      _
    // Predicated region
    $region18: #{tpu_custom_call.1} parent=1 // pred_check
      _
    $region19: #{tpu_custom_call.1} parent=1 // pred_check_branch
      %53 = sbr.rel (0) target = $region21
    $region20: #{tpu_custom_call.1} parent=1 // pred_region
      %55 = dma.done [#allocation6], 512
    $region21: #{tpu_custom_call.1} parent=1 // pred_fallthru
      _
    // Predicated region
    $region22: #{tpu_custom_call.1} parent=1 // pred_check
      _
    $region23: #{tpu_custom_call.1} parent=1 // pred_check_branch
      %57 = sbr.rel (0) target = $region25
    $region24: #{tpu_custom_call.1} parent=1 // pred_region
      %59 = dma.done [#allocation6], 32
    $region25: #{tpu_custom_call.1} parent=1 // pred_fallthru
      _
    %v60 = vld [vmem:[#allocation2] sm:$0xff]
    %v61 = vld [vmem:[#allocation2 + $0x8] sm:$0xff]
    %v62 = vld [vmem:[#allocation5] sm:$0xff]
    %v63 = vld [vmem:[#allocation5 + $0x8] sm:$0xff]
    %v64 = vld [vmem:[#allocation5 + $0x10] sm:$0xff]
    %v65 = vld [vmem:[#allocation5 + $0x18] sm:$0xff]
    %v66 = vld [vmem:[#allocation7] sm:$0x3]
    %v68 = vperm.slane %v66, 0
    %v69 = vperm.slane %v66, 1
    %vm72 = vcmask 130048
    %v74 = vsel %vm72, %v60, 0
    %v77 = vsel %vm72, %v61, 0
    %79 = vmatpush.msra.mxu0 0.0
    %80 = vmatpush.msra.mxu0 0.0
    %81 = vmatpush.msra.mxu0 0.0
    %82 = vmatpush.msra.mxu0 0.0
    %83 = vmatpush.msra.mxu0 0.0
    %84 = vmatpush.msra.mxu0 0.0
    %85 = vmatpush.msra.mxu0 0.0
    %86 = vmatpush.msra.mxu0 0.0
    %87 = vmatpush.msra.mxu0 0.0
    %88 = vmatpush.msra.mxu0 0.0
    %89 = vmatpush.msra.mxu0 0.0
    %90 = vmatpush.msra.mxu0 0.0
    %91 = vmatpush.msra.mxu0 0.0
    %92 = vmatpush.msra.mxu0 0.0
    %93 = vmatpush.msra.mxu0 %v64
    %94 = vmatpush.msra.mxu0 %v62
    %95 = vmatmul.f32.gmra.mxu0 %v74
    %v96 = vpop.f32.mrf.mxu0
    %v97 = vadd.f32 %v68, %v96
    %98 = vmatmul.f32.gmra.mxu0 %v77
    %v99 = vpop.f32.mrf.mxu0
    %v100 = vadd.f32 %v68, %v99
    %101 = vdwg.mxu0
    %102 = vmatpush.msra.mxu0 0.0
    %103 = vmatpush.msra.mxu0 0.0
    %104 = vmatpush.msra.mxu0 0.0
    %105 = vmatpush.msra.mxu0 0.0
    %106 = vmatpush.msra.mxu0 0.0
    %107 = vmatpush.msra.mxu0 0.0
    %108 = vmatpush.msra.mxu0 0.0
    %109 = vmatpush.msra.mxu0 0.0
    %110 = vmatpush.msra.mxu0 0.0
    %111 = vmatpush.msra.mxu0 0.0
    %112 = vmatpush.msra.mxu0 0.0
    %113 = vmatpush.msra.mxu0 0.0
    %114 = vmatpush.msra.mxu0 0.0
    %115 = vmatpush.msra.mxu0 0.0
    %116 = vmatpush.msra.mxu0 %v65
    %117 = vmatpush.msra.mxu0 %v63
    %118 = vmatmul.f32.gmra.mxu0 %v74
    %v119 = vpop.f32.mrf.mxu0
    %v120 = vadd.f32 %v69, %v119
    %121 = vmatmul.f32.gmra.mxu0 %v77
    %v122 = vpop.f32.mrf.mxu0
    %v123 = vadd.f32 %v69, %v122
    %124 = vdwg.mxu0
    %125 = vst [vmem:[#allocation8] sm:$0xff] %v97
    %126 = vst [vmem:[#allocation8 + $0x8] sm:$0xff] %v120
    %127 = vst [vmem:[#allocation8 + $0x10] sm:$0xff] %v100
    %128 = vst [vmem:[#allocation8 + $0x18] sm:$0xff] %v123
    // Predicated region
    $region26: #{tpu_custom_call.1} parent=1 // pred_check
      _
    $region27: #{tpu_custom_call.1} parent=1 // pred_check_branch
      %130 = sbr.rel (0) target = $region29
    $region28: #{tpu_custom_call.1} parent=1 // pred_region
      %132 = vsyncadd [#allocation4], 0
      %s133 = sshll.u32 [#allocation8], 4
      %s134 = int_to_ptr.vmem [resolvable:$true] %s133
      %s135 = sshll.u32 %s3, 4
      %s136 = int_to_ptr.hbm [resolvable:$true] %s135
      %141 = dma.vmem_to_hbm [thread:$0]  %s134, 512, %s136, [#allocation4], 256, 256, 16
    $region29: #{tpu_custom_call.1} parent=1 // pred_fallthru
      _
    // Predicated region
    $region30: #{tpu_custom_call.1} parent=1 // pred_check
      _
    $region31: #{tpu_custom_call.1} parent=1 // pred_check_branch
      %143 = sbr.rel (0) target = $region33
    $region32: #{tpu_custom_call.1} parent=1 // pred_region
      %145 = dma.done [#allocation4], 512
    $region33: #{tpu_custom_call.1} parent=1 // pred_fallthru
      _
    %146 = vsyncpa [#allocation3], 1
    %147 = vsyncpa [#allocation6], 1
    %148 = vsyncpa [#allocation4], 1

</llo_original>
